<compile_context>
chip_gen: v5e
topology: v5e:2x2
jax: 0.10.0
libtpu: 0.0.40
codegen_flags: <defaults>
</compile_context>

<pallas_src>
import jax
import jax.numpy as jnp
from jax.experimental import pallas as pl
from jax.experimental.pallas import tpu as pltpu


def _round_up(x, m):
    return ((x + m - 1) // m) * m


def _align_out_dim(d):
    # 256-alignment feeds the 2x256x256 MXUs of v6e/v7x; 128 otherwise.
    return _round_up(d, 256) if d >= 256 else _round_up(d, 128)


def _vmem_clamp_bytes():
    # ~80% of physical VMEM: ~51 MiB on v7x (64 MiB), ~102 MiB on v5e/v6e (128 MiB).
    try:
        phys = int(pltpu.get_tpu_info().vmem_capacity_bytes)
    except Exception:
        phys = 128 << 20
    return max(32 << 20, int(phys * 0.8))


def prepare_mlp_params(w1, b1, w2, b2, *, compute_dtype=None, h_chunk=512):
    """One-time pad/cast/chunk of MLP params.  w1:[F,H] b1:[H] w2:[H,O] b2:[O].

    Weights are zero-padded to lane-dense shapes and repacked with a leading
    hidden-chunk axis: w1 -> (C, Fp, th), b1 -> (C, 1, th), w2 -> (C, th, Op).
    Zero padding is exact (padded contractions contribute 0).
    """
    cdt = jnp.dtype(compute_dtype) if compute_dtype is not None else jnp.dtype(w1.dtype)
    F, H = w1.shape
    O = w2.shape[1]

    Fp = _round_up(F, 128)
    Hp = _align_out_dim(H)
    Op = _align_out_dim(O)

    h_chunk = _round_up(h_chunk, 128)
    if Hp > h_chunk:
        th = h_chunk
        Hp = _round_up(Hp, th)
    else:
        th = Hp
    num_chunks = Hp // th

    w1p = jnp.zeros((Fp, Hp), cdt).at[:F, :H].set(w1.astype(cdt))
    w1p = w1p.reshape(Fp, num_chunks, th).transpose(1, 0, 2)          # (C, Fp, th)
    b1p = jnp.zeros((1, Hp), jnp.float32).at[0, :H].set(b1.astype(jnp.float32))
    b1p = b1p.reshape(1, num_chunks, th).transpose(1, 0, 2)           # (C, 1, th)
    w2p = jnp.zeros((Hp, Op), cdt).at[:H, :O].set(w2.astype(cdt))
    w2p = w2p.reshape(num_chunks, th, Op)                             # (C, th, Op)
    b2p = jnp.zeros((1, Op), jnp.float32).at[0, :O].set(b2.astype(jnp.float32))

    return dict(w1=w1p, b1=b1p, w2=w2p, b2=b2p, cdt=cdt,
                F=F, H=H, O=O, Fp=Fp, Hp=Hp, Op=Op, th=th, num_chunks=num_chunks)


def _make_mlp_kernel(num_chunks):
    if num_chunks == 1:
        def kernel(x_ref, w1_ref, b1_ref, w2_ref, b2_ref, o_ref):
            # hidden = relu(x @ W1 + b1); f32 MXU accumulation, f32 epilogue.
            h = jnp.dot(x_ref[...], w1_ref[0], preferred_element_type=jnp.float32)
            h = jnp.maximum(h + b1_ref[0], 0.0)
            y = jnp.dot(h.astype(w2_ref.dtype), w2_ref[0],
                        preferred_element_type=jnp.float32)
            o_ref[...] = (y + b2_ref[...]).astype(o_ref.dtype)
        return kernel

    def kernel(x_ref, w1_ref, b1_ref, w2_ref, b2_ref, o_ref, acc_ref):
        x = x_ref[...]
        acc_ref[...] = jnp.zeros_like(acc_ref)

        def body(c, carry):
            # Per-chunk hidden slab; accumulate its contribution immediately so
            # only (TM, th) + (TM, Op) f32 intermediates are ever live.
            hc = jnp.dot(x, w1_ref[c], preferred_element_type=jnp.float32)
            hc = jnp.maximum(hc + b1_ref[c], 0.0)
            acc_ref[...] += jnp.dot(hc.astype(w2_ref.dtype), w2_ref[c],
                                    preferred_element_type=jnp.float32)
            return carry

        jax.lax.fori_loop(0, num_chunks, body, 0)
        o_ref[...] = (acc_ref[...] + b2_ref[...]).astype(o_ref.dtype)
    return kernel


def mlp_forward(x, params, *, block_m=256):
    """x:[B,F] -> [B,O] using prepared (padded/chunked) params."""
    cdt = params["cdt"]
    B, F = x.shape
    assert F == params["F"], "feature dim mismatch with prepared params"
    Fp, Hp, Op = params["Fp"], params["Hp"], params["Op"]
    O, th, num_chunks = params["O"], params["th"], params["num_chunks"]
    out_dtype = x.dtype

    # Batch tile: sublane-aligned, capped at ceil(B/2) so the parallel axis has
    # at least 2 tiles when B permits (v7x dual TensorCore).
    sub = 16 if cdt.itemsize == 2 else 8
    tm_cap = max(sub, _round_up(-(-B // 2), sub))
    TM = min(_round_up(block_m, sub), tm_cap)
    n_tiles = -(-B // TM)
    Bp_out = n_tiles * TM

    # Pad/cast x only when needed (skip the HBM round-trip if already aligned).
    if F != Fp or x.dtype != cdt or B != Bp_out:
        xp = jnp.zeros((Bp_out, Fp), cdt).at[:B, :F].set(x.astype(cdt))
    else:
        xp = x

    # VMEM budget: single-buffered resident weights + double-buffered x/out
    # tiles + in-kernel f32 intermediates, 1.5x headroom, per-chip clamp.
    resident = (Fp * Hp + Hp * Op) * cdt.itemsize + (Hp + Op) * 4
    streamed = 2 * TM * Fp * cdt.itemsize + 2 * TM * Op * jnp.dtype(out_dtype).itemsize
    interm = TM * th * 4 + TM * Op * 4
    vmem_bytes = int(min(max(int(1.5 * (resident + streamed + interm)), 32 << 20),
                         _vmem_clamp_bytes()))

    kernel = _make_mlp_kernel(num_chunks)
    scratch = [pltpu.VMEM((TM, Op), jnp.float32)] if num_chunks > 1 else []

    def run(single_buffer_weights):
        w_kw = ({"pipeline_mode": pl.Buffered(buffer_count=1)}
                if single_buffer_weights else {})
        grid_spec = pltpu.PrefetchScalarGridSpec(
            num_scalar_prefetch=0,
            grid=(n_tiles,),
            in_specs=[
                # x tile streams over the batch axis (auto double-buffered).
                pl.BlockSpec((TM, Fp), lambda i: (i, 0)),
                # Resident weights/biases: constant index_map, single buffer.
                pl.BlockSpec((num_chunks, Fp, th), lambda i: (0, 0, 0), **w_kw),
                pl.BlockSpec((num_chunks, 1, th), lambda i: (0, 0, 0), **w_kw),
                pl.BlockSpec((num_chunks, th, Op), lambda i: (0, 0, 0), **w_kw),
                pl.BlockSpec((1, Op), lambda i: (0, 0), **w_kw),
            ],
            out_specs=pl.BlockSpec((TM, Op), lambda i: (i, 0)),
            scratch_shapes=scratch,
        )
        return pl.pallas_call(
            kernel,
            out_shape=jax.ShapeDtypeStruct((Bp_out, Op), out_dtype),
            grid_spec=grid_spec,
            compiler_params=pltpu.CompilerParams(
                dimension_semantics=("parallel",),
                vmem_limit_bytes=vmem_bytes,
            ),
        )(xp, params["w1"], params["b1"], params["w2"], params["b2"])

    try:
        out = run(True)
    except Exception:
        # Fallback if this JAX/Mosaic build rejects Buffered(1) on pallas_call.
        out = run(False)

    if Bp_out == B and Op == O:
        return out
    return out[:B, :O]


def init_params(key, n_feature, n_hidden, n_output, dtype=jnp.float32):
    # Deterministic init mimicking nn.Linear's U(-1/sqrt(fan_in), 1/sqrt(fan_in)).
    k1, k2, k3, k4 = jax.random.split(key, 4)
    lim1 = 1.0 / (n_feature ** 0.5)
    lim2 = 1.0 / (n_hidden ** 0.5)
    w1 = jax.random.uniform(k1, (n_feature, n_hidden), dtype, -lim1, lim1)
    b1 = jax.random.uniform(k2, (n_hidden,), dtype, -lim1, lim1)
    w2 = jax.random.uniform(k3, (n_hidden, n_output), dtype, -lim2, lim2)
    b2 = jax.random.uniform(k4, (n_output,), dtype, -lim2, lim2)
    return w1, b1, w2, b2


def ref_mlp(x, w1, b1, w2, b2):
    return jnp.maximum(x @ w1 + b1, 0.0) @ w2 + b2


if __name__ == "__main__":
    n_feature, n_hidden, n_output = 16, 32, 4
    key = jax.random.PRNGKey(0)
    kx, kp, kx2, kp2 = jax.random.split(key, 4)

    # --- f32 path, small batch (single tile) ---
    w1, b1, w2, b2 = init_params(kp, n_feature, n_hidden, n_output)
    params_f32 = prepare_mlp_params(w1, b1, w2, b2)            # one-time prep
    x = jax.random.normal(kx, (8, n_feature), jnp.float32)
    out = jax.block_until_ready(mlp_forward(x, params_f32))
    assert out.shape == (8, n_output)
    assert jnp.allclose(out, ref_mlp(x, w1, b1, w2, b2), atol=1e-4, rtol=1e-4)

    # --- f32 path, multi-tile batch (exercises the pipelined parallel grid) ---
    x_big = jax.random.normal(kx2, (512, n_feature), jnp.float32)
    out_big = jax.block_until_ready(mlp_forward(x_big, params_f32))
    assert out_big.shape == (512, n_output)
    assert jnp.allclose(out_big, ref_mlp(x_big, w1, b1, w2, b2), atol=1e-4, rtol=1e-4)

    # --- chunked-hidden path (H > h_chunk -> fori_loop + VMEM accumulator) ---
    w1L, b1L, w2L, b2L = init_params(kp2, n_feature, 768, n_output)
    params_big_h = prepare_mlp_params(w1L, b1L, w2L, b2L)      # 2 hidden chunks
    out_h = jax.block_until_ready(mlp_forward(x, params_big_h))
    assert out_h.shape == (8, n_output)
    assert jnp.allclose(out_h, ref_mlp(x, w1L, b1L, w2L, b2L), atol=1e-4, rtol=1e-4)

    # --- bf16 operand path (v6e/v7x bandwidth), f32 accumulation/epilogue ---
    params_bf16 = prepare_mlp_params(w1, b1, w2, b2, compute_dtype=jnp.bfloat16)
    out_bf16 = jax.block_until_ready(mlp_forward(x, params_bf16))
    assert out_bf16.shape == (8, n_output)
    assert jnp.allclose(out_bf16, ref_mlp(x, w1, b1, w2, b2), atol=1e-1, rtol=1e-1)

    print("KERNEL_OK")
</pallas_src>

<mosaic_0001>
module attributes {stable_mosaic.version = 11 : i64} {
  func.func @kernel(%arg0: i32, %arg1: memref<8x128xf32, #tpu.memory_space<vmem>>, %arg2: memref<1x128x128xf32, #tpu.memory_space<vmem>>, %arg3: memref<1x1x128xf32, #tpu.memory_space<vmem>>, %arg4: memref<1x128x128xf32, #tpu.memory_space<vmem>>, %arg5: memref<1x128xf32, #tpu.memory_space<vmem>>, %arg6: memref<8x128xf32, #tpu.memory_space<vmem>>) attributes {dimension_semantics = [#tpu.dimension_semantics<parallel>], iteration_bounds = array<i64: 1>, scalar_prefetch = 0 : i64, scratch_operands = 0 : i64, tpu.core_type = #tpu.core_type<tc>, window_params = [{transform_indices = @transform_0, window_bounds = array<i64: 8, 128>}, {pipeline_mode = #tpu.pipeline_mode<synchronous>, transform_indices = @transform_1, window_bounds = array<i64: 1, 128, 128>}, {pipeline_mode = #tpu.pipeline_mode<synchronous>, transform_indices = @transform_2, window_bounds = array<i64: 1, 1, 128>}, {pipeline_mode = #tpu.pipeline_mode<synchronous>, transform_indices = @transform_3, window_bounds = array<i64: 1, 128, 128>}, {pipeline_mode = #tpu.pipeline_mode<synchronous>, transform_indices = @transform_4, window_bounds = array<i64: 1, 128>}, {transform_indices = @transform_5, window_bounds = array<i64: 8, 128>}]} {
    %c0 = arith.constant 0 : index
    %c0_0 = arith.constant 0 : index
    %0 = vector.load %arg1[%c0, %c0_0] : memref<8x128xf32, #tpu.memory_space<vmem>>, vector<8x128xf32>
    %c0_1 = arith.constant 0 : index
    %c0_2 = arith.constant 0 : index
    %c0_3 = arith.constant 0 : index
    %1 = vector.load %arg2[%c0_1, %c0_2, %c0_3] : memref<1x128x128xf32, #tpu.memory_space<vmem>>, vector<1x128x128xf32>
    %2 = vector.shape_cast %1 : vector<1x128x128xf32> to vector<128x128xf32>
    %cst = arith.constant dense<0.000000e+00> : vector<8x128xf32>
    %3 = tpu.matmul %0, %2, %cst {dimension_numbers = #tpu.dot_dimension_numbers<[1], [0], [0], [1], [0, 0, 1, 1], [], []>} : vector<8x128xf32>, vector<128x128xf32>, vector<8x128xf32> -> vector<8x128xf32>
    %c0_4 = arith.constant 0 : index
    %c0_5 = arith.constant 0 : index
    %c0_6 = arith.constant 0 : index
    %4 = vector.load %arg3[%c0_4, %c0_5, %c0_6] : memref<1x1x128xf32, #tpu.memory_space<vmem>>, vector<1x1x128xf32>
    %5 = vector.shape_cast %4 : vector<1x1x128xf32> to vector<1x128xf32>
    %6 = vector.broadcast %5 : vector<1x128xf32> to vector<8x128xf32>
    %7 = arith.addf %3, %6 : vector<8x128xf32>
    %cst_7 = arith.constant 0.000000e+00 : f32
    %8 = vector.broadcast %cst_7 : f32 to vector<8x128xf32>
    %9 = arith.maximumf %7, %8 : vector<8x128xf32>
    %c0_8 = arith.constant 0 : index
    %c0_9 = arith.constant 0 : index
    %c0_10 = arith.constant 0 : index
    %10 = vector.load %arg4[%c0_8, %c0_9, %c0_10] : memref<1x128x128xf32, #tpu.memory_space<vmem>>, vector<1x128x128xf32>
    %11 = vector.shape_cast %10 : vector<1x128x128xf32> to vector<128x128xf32>
    %cst_11 = arith.constant dense<0.000000e+00> : vector<8x128xf32>
    %12 = tpu.matmul %9, %11, %cst_11 {dimension_numbers = #tpu.dot_dimension_numbers<[1], [0], [0], [1], [0, 0, 1, 1], [], []>} : vector<8x128xf32>, vector<128x128xf32>, vector<8x128xf32> -> vector<8x128xf32>
    %c0_12 = arith.constant 0 : index
    %c0_13 = arith.constant 0 : index
    %13 = vector.load %arg5[%c0_12, %c0_13] : memref<1x128xf32, #tpu.memory_space<vmem>>, vector<1x128xf32>
    %14 = vector.broadcast %13 : vector<1x128xf32> to vector<8x128xf32>
    %15 = arith.addf %12, %14 : vector<8x128xf32>
    %c0_14 = arith.constant 0 : index
    %c0_15 = arith.constant 0 : index
    %16 = vector.load %arg6[%c0_14, %c0_15] : memref<8x128xf32, #tpu.memory_space<vmem>>, vector<8x128xf32>
    tpu.vector_store %arg6[%c0_14, %c0_15], %15 {strides = array<i32>} : memref<8x128xf32, #tpu.memory_space<vmem>>, vector<8x128xf32>,
    return
  }
  func.func @transform_0(%arg0: i32) -> (i32, i32) {
    %c0_i32 = arith.constant 0 : i32
    %c0_i32_0 = arith.constant 0 : i32
    return %arg0, %c0_i32 : i32, i32
  }
  func.func @transform_1(%arg0: i32) -> (i32, i32, i32) {
    %c0_i32 = arith.constant 0 : i32
    %c0_i32_0 = arith.constant 0 : i32
    %c0_i32_1 = arith.constant 0 : i32
    %c0_i32_2 = arith.constant 0 : i32
    return %c0_i32, %c0_i32_0, %c0_i32_1 : i32, i32, i32
  }
  func.func @transform_2(%arg0: i32) -> (i32, i32, i32) {
    %c0_i32 = arith.constant 0 : i32
    %c0_i32_0 = arith.constant 0 : i32
    %c0_i32_1 = arith.constant 0 : i32
    %c0_i32_2 = arith.constant 0 : i32
    return %c0_i32, %c0_i32_0, %c0_i32_1 : i32, i32, i32
  }
  func.func @transform_3(%arg0: i32) -> (i32, i32, i32) {
    %c0_i32 = arith.constant 0 : i32
    %c0_i32_0 = arith.constant 0 : i32
    %c0_i32_1 = arith.constant 0 : i32
    %c0_i32_2 = arith.constant 0 : i32
    return %c0_i32, %c0_i32_0, %c0_i32_1 : i32, i32, i32
  }
  func.func @transform_4(%arg0: i32) -> (i32, i32) {
    %c0_i32 = arith.constant 0 : i32
    %c0_i32_0 = arith.constant 0 : i32
    %c0_i32_1 = arith.constant 0 : i32
    return %c0_i32, %c0_i32_0 : i32, i32
  }
  func.func @transform_5(%arg0: i32) -> (i32, i32) {
    %c0_i32 = arith.constant 0 : i32
    %c0_i32_0 = arith.constant 0 : i32
    return %arg0, %c0_i32 : i32, i32
  }
}

module attributes {stable_mosaic.version = 11 : i64} {
  func.func @kernel(%arg0: i32, %arg1: memref<8x128xf32, #tpu.memory_space<vmem>>, %arg2: memref<1x128x128xf32, #tpu.memory_space<vmem>>, %arg3: memref<1x1x128xf32, #tpu.memory_space<vmem>>, %arg4: memref<1x128x128xf32, #tpu.memory_space<vmem>>, %arg5: memref<1x128xf32, #tpu.memory_space<vmem>>, %arg6: memref<8x128xf32, #tpu.memory_space<vmem>>) attributes {dimension_semantics = [#tpu.dimension_semantics<parallel>], iteration_bounds = array<i64: 1>, scalar_prefetch = 0 : i64, scratch_operands = 0 : i64, tpu.core_type = #tpu.core_type<tc>, window_params = [{transform_indices = @transform_0, window_bounds = array<i64: 8, 128>}, {pipeline_mode = #tpu.pipeline_mode<synchronous>, transform_indices = @transform_1, window_bounds = array<i64: 1, 128, 128>}, {pipeline_mode = #tpu.pipeline_mode<synchronous>, transform_indices = @transform_2, window_bounds = array<i64: 1, 1, 128>}, {pipeline_mode = #tpu.pipeline_mode<synchronous>, transform_indices = @transform_3, window_bounds = array<i64: 1, 128, 128>}, {pipeline_mode = #tpu.pipeline_mode<synchronous>, transform_indices = @transform_4, window_bounds = array<i64: 1, 128>}, {transform_indices = @transform_5, window_bounds = array<i64: 8, 128>}]} {
    %c0 = arith.constant 0 : index
    %c0_0 = arith.constant 0 : index
    %0 = vector.load %arg1[%c0, %c0_0] : memref<8x128xf32, #tpu.memory_space<vmem>>, vector<8x128xf32>
    %c0_1 = arith.constant 0 : index
    %c0_2 = arith.constant 0 : index
    %c0_3 = arith.constant 0 : index
    %1 = vector.load %arg2[%c0_1, %c0_2, %c0_3] : memref<1x128x128xf32, #tpu.memory_space<vmem>>, vector<1x128x128xf32>
    %2 = vector.shape_cast %1 : vector<1x128x128xf32> to vector<128x128xf32>
    %cst = arith.constant dense<0.000000e+00> : vector<8x128xf32>
    %3 = tpu.matmul %0, %2, %cst {dimension_numbers = #tpu.dot_dimension_numbers<[1], [0], [0], [1], [0, 0, 1, 1], [], []>} : vector<8x128xf32>, vector<128x128xf32>, vector<8x128xf32> -> vector<8x128xf32>
    %c0_4 = arith.constant 0 : index
    %c0_5 = arith.constant 0 : index
    %c0_6 = arith.constant 0 : index
    %4 = vector.load %arg3[%c0_4, %c0_5, %c0_6] : memref<1x1x128xf32, #tpu.memory_space<vmem>>, vector<1x1x128xf32>
    %5 = vector.shape_cast %4 : vector<1x1x128xf32> to vector<1x128xf32>
    %6 = vector.broadcast %5 : vector<1x128xf32> to vector<8x128xf32>
    %7 = arith.addf %3, %6 : vector<8x128xf32>
    %cst_7 = arith.constant 0.000000e+00 : f32
    %8 = vector.broadcast %cst_7 : f32 to vector<8x128xf32>
    %9 = arith.maximumf %7, %8 : vector<8x128xf32>
    %c0_8 = arith.constant 0 : index
    %c0_9 = arith.constant 0 : index
    %c0_10 = arith.constant 0 : index
    %10 = vector.load %arg4[%c0_8, %c0_9, %c0_10] : memref<1x128x128xf32, #tpu.memory_space<vmem>>, vector<1x128x128xf32>
    %11 = vector.shape_cast %10 : vector<1x128x128xf32> to vector<128x128xf32>
    %cst_11 = arith.constant dense<0.000000e+00> : vector<8x128xf32>
    %12 = tpu.matmul %9, %11, %cst_11 {dimension_numbers = #tpu.dot_dimension_numbers<[1], [0], [0], [1], [0, 0, 1, 1], [], []>} : vector<8x128xf32>, vector<128x128xf32>, vector<8x128xf32> -> vector<8x128xf32>
    %c0_12 = arith.constant 0 : index
    %c0_13 = arith.constant 0 : index
    %13 = vector.load %arg5[%c0_12, %c0_13] : memref<1x128xf32, #tpu.memory_space<vmem>>, vector<1x128xf32>
    %14 = vector.broadcast %13 : vector<1x128xf32> to vector<8x128xf32>
    %15 = arith.addf %12, %14 : vector<8x128xf32>
    %c0_14 = arith.constant 0 : index
    %c0_15 = arith.constant 0 : index
    %16 = vector.load %arg6[%c0_14, %c0_15] : memref<8x128xf32, #tpu.memory_space<vmem>>, vector<8x128xf32>
    tpu.vector_store %arg6[%c0_14, %c0_15], %15 {strides = array<i32>} : memref<8x128xf32, #tpu.memory_space<vmem>>, vector<8x128xf32>,
    return
  }
  func.func @transform_0(%arg0: i32) -> (i32, i32) {
    %c0_i32 = arith.constant 0 : i32
    %c0_i32_0 = arith.constant 0 : i32
    return %arg0, %c0_i32 : i32, i32
  }
  func.func @transform_1(%arg0: i32) -> (i32, i32, i32) {
    %c0_i32 = arith.constant 0 : i32
    %c0_i32_0 = arith.constant 0 : i32
    %c0_i32_1 = arith.constant 0 : i32
    %c0_i32_2 = arith.constant 0 : i32
    return %c0_i32, %c0_i32_0, %c0_i32_1 : i32, i32, i32
  }
  func.func @transform_2(%arg0: i32) -> (i32, i32, i32) {
    %c0_i32 = arith.constant 0 : i32
    %c0_i32_0 = arith.constant 0 : i32
    %c0_i32_1 = arith.constant 0 : i32
    %c0_i32_2 = arith.constant 0 : i32
    return %c0_i32, %c0_i32_0, %c0_i32_1 : i32, i32, i32
  }
  func.func @transform_3(%arg0: i32) -> (i32, i32, i32) {
    %c0_i32 = arith.constant 0 : i32
    %c0_i32_0 = arith.constant 0 : i32
    %c0_i32_1 = arith.constant 0 : i32
    %c0_i32_2 = arith.constant 0 : i32
    return %c0_i32, %c0_i32_0, %c0_i32_1 : i32, i32, i32
  }
  func.func @transform_4(%arg0: i32) -> (i32, i32) {
    %c0_i32 = arith.constant 0 : i32
    %c0_i32_0 = arith.constant 0 : i32
    %c0_i32_1 = arith.constant 0 : i32
    return %c0_i32, %c0_i32_0 : i32, i32
  }
  func.func @transform_5(%arg0: i32) -> (i32, i32) {
    %c0_i32 = arith.constant 0 : i32
    %c0_i32_0 = arith.constant 0 : i32
    return %arg0, %c0_i32 : i32, i32
  }
}

</mosaic_0001>

<llo_original>
// kernel: tpu_custom_call.1
$region0: #{tpu_custom_call.1}
  #allocation0 [shape = 'u32[]', space=smem, size = 0x4, offset = 0x4, fixed_abs, tag = 'smem constant byte address 0x4 - core index']
  #allocation1 [shape = 'u32[72,128]{1,0:T(1,128)}', space=vmem, size = 0x9000, scoped, tag = 'internal scratch']
  %s0 = inlined_call_operand.hbm [shape: f32[8,128], index: 0, kind: input, shape index: {}]
  %s1 = inlined_call_operand.hbm [shape: f32[1,128,128], index: 1, kind: input, shape index: {}]
  %s2 = inlined_call_operand.vmem [shape: f32[1,1,128], index: 2, kind: input, shape index: {}]
  %s3 = inlined_call_operand.hbm [shape: f32[1,128,128], index: 3, kind: input, shape index: {}]
  %s4 = inlined_call_operand.vmem [shape: f32[1,128], index: 4, kind: input, shape index: {}]
  %s5 = inlined_call_operand.hbm [shape: f32[8,128], index: 5, kind: output, shape index: {}]
  %s6 = sld [smem:[#allocation0]]
  $region42: #{tpu_custom_call.1} parent=0
    _
  %s8 = ssub.s32 1, %s6
  %s9 = scalar_select 0, %s8, %s6
  $region1: #{tpu_custom_call.1} parent=0
    #allocation2 [shape = 'u8[4096]{0}', space=vmem, size = 0x1000, scoped, tag = 'input window, operand 0, single buffered']
    #allocation3 [shape = 's32[1]{0}', space=sflag, size = 0x4, scoped, tag = 'scoped memory for tpu_custom_call.1']
    #allocation4 [shape = 's32[1]{0}', space=sflag, size = 0x4, scoped, tag = 'scoped memory for tpu_custom_call.1']
    #allocation5 [shape = 'u8[65536]{0}', space=vmem, size = 0x10000, scoped, tag = 'input window, operand 1, single buffered']
    #allocation6 [shape = 's32[1]{0}', space=sflag, size = 0x4, scoped, tag = 'scoped memory for tpu_custom_call.1']
    #allocation7 [shape = 'u8[65536]{0}', space=vmem, size = 0x10000, scoped, tag = 'input window, operand 3, single buffered']
    #allocation8 [shape = 'u8[4096]{0}', space=vmem, size = 0x1000, scoped, tag = 'output window, operand 0, single buffered']
    %10 = vsyncpa [#allocation3], 0
    %11 = vsyncpa [#allocation6], 0
    %12 = vsyncpa [#allocation4], 0
    // Predicated region
    $region2: #{tpu_custom_call.1} parent=1 // pred_check
      _
    $region3: #{tpu_custom_call.1} parent=1 // pred_check_branch
      %14 = sbr.rel (0) target = $region5
    $region4: #{tpu_custom_call.1} parent=1 // pred_region
      %16 = vsyncadd [#allocation3], 0
      %s18 = sshll.u32 %s0, 4
      %s19 = int_to_ptr.hbm [resolvable:$true] %s18
      %s20 = sshll.u32 [#allocation2], 4
      %s21 = int_to_ptr.vmem [resolvable:$true] %s20
      %23 = dma.hbm_to_vmem [thread:$0]  %s19, 128, %s21, [#allocation3]
    $region5: #{tpu_custom_call.1} parent=1 // pred_fallthru
      _
    // Predicated region
    $region6: #{tpu_custom_call.1} parent=1 // pred_check
      _
    $region7: #{tpu_custom_call.1} parent=1 // pred_check_branch
      %25 = sbr.rel (0) target = $region9
    $region8: #{tpu_custom_call.1} parent=1 // pred_region
      %27 = vsyncadd [#allocation6], 0
      %s28 = sshll.u32 %s1, 4
      %s29 = int_to_ptr.hbm [resolvable:$true] %s28
      %s30 = sshll.u32 [#allocation5], 4
      %s31 = int_to_ptr.vmem [resolvable:$true] %s30
      %36 = dma.hbm_to_vmem [thread:$0]  %s29, 2048, %s31, [#allocation6], 128, 128, 8
    $region9: #{tpu_custom_call.1} parent=1 // pred_fallthru
      _
    // Predicated region
    $region10: #{tpu_custom_call.1} parent=1 // pred_check
      _
    $region11: #{tpu_custom_call.1} parent=1 // pred_check_branch
      %38 = sbr.rel (0) target = $region13
    $region12: #{tpu_custom_call.1} parent=1 // pred_region
      _
    $region13: #{tpu_custom_call.1} parent=1 // pred_fallthru
      _
    // Predicated region
    $region14: #{tpu_custom_call.1} parent=1 // pred_check
      _
    $region15: #{tpu_custom_call.1} parent=1 // pred_check_branch
      %40 = sbr.rel (0) target = $region17
    $region16: #{tpu_custom_call.1} parent=1 // pred_region
      %42 = vsyncadd [#allocation6], 0
      %s43 = sshll.u32 %s3, 4
      %s44 = int_to_ptr.hbm [resolvable:$true] %s43
      %s45 = sshll.u32 [#allocation7], 4
      %s46 = int_to_ptr.vmem [resolvable:$true] %s45
      %51 = dma.hbm_to_vmem [thread:$0]  %s44, 2048, %s46, [#allocation6], 128, 128, 8
    $region17: #{tpu_custom_call.1} parent=1 // pred_fallthru
      _
    // Predicated region
    $region18: #{tpu_custom_call.1} parent=1 // pred_check
      _
    $region19: #{tpu_custom_call.1} parent=1 // pred_check_branch
      %53 = sbr.rel (0) target = $region21
    $region20: #{tpu_custom_call.1} parent=1 // pred_region
      _
    $region21: #{tpu_custom_call.1} parent=1 // pred_fallthru
      _
    // Predicated region
    $region22: #{tpu_custom_call.1} parent=1 // pred_check
      _
    $region23: #{tpu_custom_call.1} parent=1 // pred_check_branch
      %55 = sbr.rel (0) target = $region25
    $region24: #{tpu_custom_call.1} parent=1 // pred_region
      %57 = dma.done [#allocation3], 128
    $region25: #{tpu_custom_call.1} parent=1 // pred_fallthru
      _
    // Predicated region
    $region26: #{tpu_custom_call.1} parent=1 // pred_check
      _
    $region27: #{tpu_custom_call.1} parent=1 // pred_check_branch
      %59 = sbr.rel (0) target = $region29
    $region28: #{tpu_custom_call.1} parent=1 // pred_region
      %61 = dma.done [#allocation6], 2048
    $region29: #{tpu_custom_call.1} parent=1 // pred_fallthru
      _
    // Predicated region
    $region30: #{tpu_custom_call.1} parent=1 // pred_check
      _
    $region31: #{tpu_custom_call.1} parent=1 // pred_check_branch
      %63 = sbr.rel (0) target = $region33
    $region32: #{tpu_custom_call.1} parent=1 // pred_region
      %65 = dma.done [#allocation6], 2048
    $region33: #{tpu_custom_call.1} parent=1 // pred_fallthru
      _
    %v66 = vld [vmem:[#allocation2] sm:$0xff]
    %v67 = vld [vmem:[#allocation5] sm:$0xff]
    %v68 = vld [vmem:[#allocation5 + $0x8] sm:$0xff]
    %v69 = vld [vmem:[#allocation5 + $0x10] sm:$0xff]
    %v70 = vld [vmem:[#allocation5 + $0x18] sm:$0xff]
    %v71 = vld [vmem:[#allocation5 + $0x20] sm:$0xff]
    %v72 = vld [vmem:[#allocation5 + $0x28] sm:$0xff]
    %v73 = vld [vmem:[#allocation5 + $0x30] sm:$0xff]
    %v74 = vld [vmem:[#allocation5 + $0x38] sm:$0xff]
    %v75 = vld [vmem:[#allocation5 + $0x40] sm:$0xff]
    %v76 = vld [vmem:[#allocation5 + $0x48] sm:$0xff]
    %v77 = vld [vmem:[#allocation5 + $0x50] sm:$0xff]
    %v78 = vld [vmem:[#allocation5 + $0x58] sm:$0xff]
    %v79 = vld [vmem:[#allocation5 + $0x60] sm:$0xff]
    %v80 = vld [vmem:[#allocation5 + $0x68] sm:$0xff]
    %v81 = vld [vmem:[#allocation5 + $0x70] sm:$0xff]
    %v82 = vld [vmem:[#allocation5 + $0x78] sm:$0xff]
    %v83 = vld [vmem:[%s2] sm:$0x1]
    %v85 = vperm.slane %v83, 0
    %87 = vmatpush.msra.mxu0 %v82
    %88 = vmatpush.msra.mxu0 %v81
    %89 = vmatpush.msra.mxu0 %v80
    %90 = vmatpush.msra.mxu0 %v79
    %91 = vmatpush.msra.mxu0 %v78
    %92 = vmatpush.msra.mxu0 %v77
    %93 = vmatpush.msra.mxu0 %v76
    %94 = vmatpush.msra.mxu0 %v75
    %95 = vmatpush.msra.mxu0 %v74
    %96 = vmatpush.msra.mxu0 %v73
    %97 = vmatpush.msra.mxu0 %v72
    %98 = vmatpush.msra.mxu0 %v71
    %99 = vmatpush.msra.mxu0 %v70
    %100 = vmatpush.msra.mxu0 %v69
    %101 = vmatpush.msra.mxu0 %v68
    %102 = vmatpush.msra.mxu0 %v67
    %103 = vmatmul.f32.gmra.mxu0 %v66
    %v104 = vpop.f32.mrf.mxu0
    %v105 = vadd.f32 %v85, %v104
    %106 = vdwg.mxu0
    %v107 = vmax.f32 %v105, 0.0
    %v108 = vld [vmem:[#allocation7] sm:$0xff]
    %v109 = vld [vmem:[#allocation7 + $0x8] sm:$0xff]
    %v110 = vld [vmem:[#allocation7 + $0x10] sm:$0xff]
    %v111 = vld [vmem:[#allocation7 + $0x18] sm:$0xff]
    %v112 = vld [vmem:[#allocation7 + $0x20] sm:$0xff]
    %v113 = vld [vmem:[#allocation7 + $0x28] sm:$0xff]
    %v114 = vld [vmem:[#allocation7 + $0x30] sm:$0xff]
    %v115 = vld [vmem:[#allocation7 + $0x38] sm:$0xff]
    %v116 = vld [vmem:[#allocation7 + $0x40] sm:$0xff]
    %v117 = vld [vmem:[#allocation7 + $0x48] sm:$0xff]
    %v118 = vld [vmem:[#allocation7 + $0x50] sm:$0xff]
    %v119 = vld [vmem:[#allocation7 + $0x58] sm:$0xff]
    %v120 = vld [vmem:[#allocation7 + $0x60] sm:$0xff]
    %v121 = vld [vmem:[#allocation7 + $0x68] sm:$0xff]
    %v122 = vld [vmem:[#allocation7 + $0x70] sm:$0xff]
    %v123 = vld [vmem:[#allocation7 + $0x78] sm:$0xff]
    %v124 = vld [vmem:[%s4] sm:$0x1]
    %v126 = vperm.slane %v124, 0
    %128 = vmatpush.msra.mxu0 %v123
    %129 = vmatpush.msra.mxu0 %v122
    %130 = vmatpush.msra.mxu0 %v121
    %131 = vmatpush.msra.mxu0 %v120
    %132 = vmatpush.msra.mxu0 %v119
    %133 = vmatpush.msra.mxu0 %v118
    %134 = vmatpush.msra.mxu0 %v117
    %135 = vmatpush.msra.mxu0 %v116
    %136 = vmatpush.msra.mxu0 %v115
    %137 = vmatpush.msra.mxu0 %v114
    %138 = vmatpush.msra.mxu0 %v113
    %139 = vmatpush.msra.mxu0 %v112
    %140 = vmatpush.msra.mxu0 %v111
    %141 = vmatpush.msra.mxu0 %v110
    %142 = vmatpush.msra.mxu0 %v109
    %143 = vmatpush.msra.mxu0 %v108
    %144 = vmatmul.f32.gmra.mxu0 %v107
    %v145 = vpop.f32.mrf.mxu0
    %v146 = vadd.f32 %v126, %v145
    %147 = vdwg.mxu0
    %148 = vst [vmem:[#allocation8] sm:$0xff] %v146
    // Predicated region
    $region34: #{tpu_custom_call.1} parent=1 // pred_check
      _
    $region35: #{tpu_custom_call.1} parent=1 // pred_check_branch
      %150 = sbr.rel (0) target = $region37
    $region36: #{tpu_custom_call.1} parent=1 // pred_region
      %152 = vsyncadd [#allocation4], 0
      %s154 = sshll.u32 [#allocation8], 4
      %s155 = int_to_ptr.vmem [resolvable:$true] %s154
      %s156 = sshll.u32 %s5, 4
      %s157 = int_to_ptr.hbm [resolvable:$true] %s156
      %159 = dma.vmem_to_hbm [thread:$0]  %s155, 128, %s157, [#allocation4]
    $region37: #{tpu_custom_call.1} parent=1 // pred_fallthru
      _
    // Predicated region
    $region38: #{tpu_custom_call.1} parent=1 // pred_check
      _
    $region39: #{tpu_custom_call.1} parent=1 // pred_check_branch
      %161 = sbr.rel (0) target = $region41
    $region40: #{tpu_custom_call.1} parent=1 // pred_region
      %163 = dma.done [#allocation4], 128
    $region41: #{tpu_custom_call.1} parent=1 // pred_fallthru
      _
    %164 = vsyncpa [#allocation3], 1
    %165 = vsyncpa [#allocation6], 1
    %166 = vsyncpa [#allocation4], 1

// kernel: tpu_custom_call.1
$region0: #{tpu_custom_call.1}
  #allocation0 [shape = 'u32[]', space=smem, size = 0x4, offset = 0x4, fixed_abs, tag = 'smem constant byte address 0x4 - core index']
  #allocation1 [shape = 'u32[72,128]{1,0:T(1,128)}', space=vmem, size = 0x9000, scoped, tag = 'internal scratch']
  %s0 = inlined_call_operand.hbm [shape: f32[8,128], index: 0, kind: input, shape index: {}]
  %s1 = inlined_call_operand.hbm [shape: f32[1,128,128], index: 1, kind: input, shape index: {}]
  %s2 = inlined_call_operand.vmem [shape: f32[1,1,128], index: 2, kind: input, shape index: {}]
  %s3 = inlined_call_operand.hbm [shape: f32[1,128,128], index: 3, kind: input, shape index: {}]
  %s4 = inlined_call_operand.vmem [shape: f32[1,128], index: 4, kind: input, shape index: {}]
  %s5 = inlined_call_operand.hbm [shape: f32[8,128], index: 5, kind: output, shape index: {}]
  %s6 = sld [smem:[#allocation0]]
  $region42: #{tpu_custom_call.1} parent=0
    _
  %s8 = ssub.s32 1, %s6
  %s9 = scalar_select 0, %s8, %s6
  $region1: #{tpu_custom_call.1} parent=0
    #allocation2 [shape = 'u8[4096]{0}', space=vmem, size = 0x1000, scoped, tag = 'input window, operand 0, single buffered']
    #allocation3 [shape = 's32[1]{0}', space=sflag, size = 0x4, scoped, tag = 'scoped memory for tpu_custom_call.1']
    #allocation4 [shape = 's32[1]{0}', space=sflag, size = 0x4, scoped, tag = 'scoped memory for tpu_custom_call.1']
    #allocation5 [shape = 'u8[65536]{0}', space=vmem, size = 0x10000, scoped, tag = 'input window, operand 1, single buffered']
    #allocation6 [shape = 's32[1]{0}', space=sflag, size = 0x4, scoped, tag = 'scoped memory for tpu_custom_call.1']
    #allocation7 [shape = 'u8[65536]{0}', space=vmem, size = 0x10000, scoped, tag = 'input window, operand 3, single buffered']
    #allocation8 [shape = 'u8[4096]{0}', space=vmem, size = 0x1000, scoped, tag = 'output window, operand 0, single buffered']
    %10 = vsyncpa [#allocation3], 0
    %11 = vsyncpa [#allocation6], 0
    %12 = vsyncpa [#allocation4], 0
    // Predicated region
    $region2: #{tpu_custom_call.1} parent=1 // pred_check
      _
    $region3: #{tpu_custom_call.1} parent=1 // pred_check_branch
      %14 = sbr.rel (0) target = $region5
    $region4: #{tpu_custom_call.1} parent=1 // pred_region
      %16 = vsyncadd [#allocation3], 0
      %s18 = sshll.u32 %s0, 4
      %s19 = int_to_ptr.hbm [resolvable:$true] %s18
      %s20 = sshll.u32 [#allocation2], 4
      %s21 = int_to_ptr.vmem [resolvable:$true] %s20
      %23 = dma.hbm_to_vmem [thread:$0]  %s19, 128, %s21, [#allocation3]
    $region5: #{tpu_custom_call.1} parent=1 // pred_fallthru
      _
    // Predicated region
    $region6: #{tpu_custom_call.1} parent=1 // pred_check
      _
    $region7: #{tpu_custom_call.1} parent=1 // pred_check_branch
      %25 = sbr.rel (0) target = $region9
    $region8: #{tpu_custom_call.1} parent=1 // pred_region
      %27 = vsyncadd [#allocation6], 0
      %s28 = sshll.u32 %s1, 4
      %s29 = int_to_ptr.hbm [resolvable:$true] %s28
      %s30 = sshll.u32 [#allocation5], 4
      %s31 = int_to_ptr.vmem [resolvable:$true] %s30
      %36 = dma.hbm_to_vmem [thread:$0]  %s29, 2048, %s31, [#allocation6], 128, 128, 8
    $region9: #{tpu_custom_call.1} parent=1 // pred_fallthru
      _
    // Predicated region
    $region10: #{tpu_custom_call.1} parent=1 // pred_check
      _
    $region11: #{tpu_custom_call.1} parent=1 // pred_check_branch
      %38 = sbr.rel (0) target = $region13
    $region12: #{tpu_custom_call.1} parent=1 // pred_region
      _
    $region13: #{tpu_custom_call.1} parent=1 // pred_fallthru
      _
    // Predicated region
    $region14: #{tpu_custom_call.1} parent=1 // pred_check
      _
    $region15: #{tpu_custom_call.1} parent=1 // pred_check_branch
      %40 = sbr.rel (0) target = $region17
    $region16: #{tpu_custom_call.1} parent=1 // pred_region
      %42 = vsyncadd [#allocation6], 0
      %s43 = sshll.u32 %s3, 4
      %s44 = int_to_ptr.hbm [resolvable:$true] %s43
      %s45 = sshll.u32 [#allocation7], 4
      %s46 = int_to_ptr.vmem [resolvable:$true] %s45
      %51 = dma.hbm_to_vmem [thread:$0]  %s44, 2048, %s46, [#allocation6], 128, 128, 8
    $region17: #{tpu_custom_call.1} parent=1 // pred_fallthru
      _
    // Predicated region
    $region18: #{tpu_custom_call.1} parent=1 // pred_check
      _
    $region19: #{tpu_custom_call.1} parent=1 // pred_check_branch
      %53 = sbr.rel (0) target = $region21
    $region20: #{tpu_custom_call.1} parent=1 // pred_region
      _
    $region21: #{tpu_custom_call.1} parent=1 // pred_fallthru
      _
    // Predicated region
    $region22: #{tpu_custom_call.1} parent=1 // pred_check
      _
    $region23: #{tpu_custom_call.1} parent=1 // pred_check_branch
      %55 = sbr.rel (0) target = $region25
    $region24: #{tpu_custom_call.1} parent=1 // pred_region
      %57 = dma.done [#allocation3], 128
    $region25: #{tpu_custom_call.1} parent=1 // pred_fallthru
      _
    // Predicated region
    $region26: #{tpu_custom_call.1} parent=1 // pred_check
      _
    $region27: #{tpu_custom_call.1} parent=1 // pred_check_branch
      %59 = sbr.rel (0) target = $region29
    $region28: #{tpu_custom_call.1} parent=1 // pred_region
      %61 = dma.done [#allocation6], 2048
    $region29: #{tpu_custom_call.1} parent=1 // pred_fallthru
      _
    // Predicated region
    $region30: #{tpu_custom_call.1} parent=1 // pred_check
      _
    $region31: #{tpu_custom_call.1} parent=1 // pred_check_branch
      %63 = sbr.rel (0) target = $region33
    $region32: #{tpu_custom_call.1} parent=1 // pred_region
      %65 = dma.done [#allocation6], 2048
    $region33: #{tpu_custom_call.1} parent=1 // pred_fallthru
      _
    %v66 = vld [vmem:[#allocation2] sm:$0xff]
    %v67 = vld [vmem:[#allocation5] sm:$0xff]
    %v68 = vld [vmem:[#allocation5 + $0x8] sm:$0xff]
    %v69 = vld [vmem:[#allocation5 + $0x10] sm:$0xff]
    %v70 = vld [vmem:[#allocation5 + $0x18] sm:$0xff]
    %v71 = vld [vmem:[#allocation5 + $0x20] sm:$0xff]
    %v72 = vld [vmem:[#allocation5 + $0x28] sm:$0xff]
    %v73 = vld [vmem:[#allocation5 + $0x30] sm:$0xff]
    %v74 = vld [vmem:[#allocation5 + $0x38] sm:$0xff]
    %v75 = vld [vmem:[#allocation5 + $0x40] sm:$0xff]
    %v76 = vld [vmem:[#allocation5 + $0x48] sm:$0xff]
    %v77 = vld [vmem:[#allocation5 + $0x50] sm:$0xff]
    %v78 = vld [vmem:[#allocation5 + $0x58] sm:$0xff]
    %v79 = vld [vmem:[#allocation5 + $0x60] sm:$0xff]
    %v80 = vld [vmem:[#allocation5 + $0x68] sm:$0xff]
    %v81 = vld [vmem:[#allocation5 + $0x70] sm:$0xff]
    %v82 = vld [vmem:[#allocation5 + $0x78] sm:$0xff]
    %v83 = vld [vmem:[%s2] sm:$0x1]
    %v85 = vperm.slane %v83, 0
    %87 = vmatpush.msra.mxu0 %v82
    %88 = vmatpush.msra.mxu0 %v81
    %89 = vmatpush.msra.mxu0 %v80
    %90 = vmatpush.msra.mxu0 %v79
    %91 = vmatpush.msra.mxu0 %v78
    %92 = vmatpush.msra.mxu0 %v77
    %93 = vmatpush.msra.mxu0 %v76
    %94 = vmatpush.msra.mxu0 %v75
    %95 = vmatpush.msra.mxu0 %v74
    %96 = vmatpush.msra.mxu0 %v73
    %97 = vmatpush.msra.mxu0 %v72
    %98 = vmatpush.msra.mxu0 %v71
    %99 = vmatpush.msra.mxu0 %v70
    %100 = vmatpush.msra.mxu0 %v69
    %101 = vmatpush.msra.mxu0 %v68
    %102 = vmatpush.msra.mxu0 %v67
    %103 = vmatmul.f32.gmra.mxu0 %v66
    %v104 = vpop.f32.mrf.mxu0
    %v105 = vadd.f32 %v85, %v104
    %106 = vdwg.mxu0
    %v107 = vmax.f32 %v105, 0.0
    %v108 = vld [vmem:[#allocation7] sm:$0xff]
    %v109 = vld [vmem:[#allocation7 + $0x8] sm:$0xff]
    %v110 = vld [vmem:[#allocation7 + $0x10] sm:$0xff]
    %v111 = vld [vmem:[#allocation7 + $0x18] sm:$0xff]
    %v112 = vld [vmem:[#allocation7 + $0x20] sm:$0xff]
    %v113 = vld [vmem:[#allocation7 + $0x28] sm:$0xff]
    %v114 = vld [vmem:[#allocation7 + $0x30] sm:$0xff]
    %v115 = vld [vmem:[#allocation7 + $0x38] sm:$0xff]
    %v116 = vld [vmem:[#allocation7 + $0x40] sm:$0xff]
    %v117 = vld [vmem:[#allocation7 + $0x48] sm:$0xff]
    %v118 = vld [vmem:[#allocation7 + $0x50] sm:$0xff]
    %v119 = vld [vmem:[#allocation7 + $0x58] sm:$0xff]
    %v120 = vld [vmem:[#allocation7 + $0x60] sm:$0xff]
    %v121 = vld [vmem:[#allocation7 + $0x68] sm:$0xff]
    %v122 = vld [vmem:[#allocation7 + $0x70] sm:$0xff]
    %v123 = vld [vmem:[#allocation7 + $0x78] sm:$0xff]
    %v124 = vld [vmem:[%s4] sm:$0x1]
    %v126 = vperm.slane %v124, 0
    %128 = vmatpush.msra.mxu0 %v123
    %129 = vmatpush.msra.mxu0 %v122
    %130 = vmatpush.msra.mxu0 %v121
    %131 = vmatpush.msra.mxu0 %v120
    %132 = vmatpush.msra.mxu0 %v119
    %133 = vmatpush.msra.mxu0 %v118
    %134 = vmatpush.msra.mxu0 %v117
    %135 = vmatpush.msra.mxu0 %v116
    %136 = vmatpush.msra.mxu0 %v115
    %137 = vmatpush.msra.mxu0 %v114
    %138 = vmatpush.msra.mxu0 %v113
    %139 = vmatpush.msra.mxu0 %v112
    %140 = vmatpush.msra.mxu0 %v111
    %141 = vmatpush.msra.mxu0 %v110
    %142 = vmatpush.msra.mxu0 %v109
    %143 = vmatpush.msra.mxu0 %v108
    %144 = vmatmul.f32.gmra.mxu0 %v107
    %v145 = vpop.f32.mrf.mxu0
    %v146 = vadd.f32 %v126, %v145
    %147 = vdwg.mxu0
    %148 = vst [vmem:[#allocation8] sm:$0xff] %v146
    // Predicated region
    $region34: #{tpu_custom_call.1} parent=1 // pred_check
      _
    $region35: #{tpu_custom_call.1} parent=1 // pred_check_branch
      %150 = sbr.rel (0) target = $region37
    $region36: #{tpu_custom_call.1} parent=1 // pred_region
      %152 = vsyncadd [#allocation4], 0
      %s154 = sshll.u32 [#allocation8], 4
      %s155 = int_to_ptr.vmem [resolvable:$true] %s154
      %s156 = sshll.u32 %s5, 4
      %s157 = int_to_ptr.hbm [resolvable:$true] %s156
      %159 = dma.vmem_to_hbm [thread:$0]  %s155, 128, %s157, [#allocation4]
    $region37: #{tpu_custom_call.1} parent=1 // pred_fallthru
      _
    // Predicated region
    $region38: #{tpu_custom_call.1} parent=1 // pred_check
      _
    $region39: #{tpu_custom_call.1} parent=1 // pred_check_branch
      %161 = sbr.rel (0) target = $region41
    $region40: #{tpu_custom_call.1} parent=1 // pred_region
      %163 = dma.done [#allocation4], 128
    $region41: #{tpu_custom_call.1} parent=1 // pred_fallthru
      _
    %164 = vsyncpa [#allocation3], 1
    %165 = vsyncpa [#allocation6], 1
    %166 = vsyncpa [#allocation4], 1

</llo_original>
